<compile_context>
chip_gen: v7x
topology: tpu7x:2x2x1
jax: 0.10.0
libtpu: 0.0.40
codegen_flags: <defaults>
</compile_context>

<pallas_src>
import jax
import jax.numpy as jnp
from jax.experimental import pallas as pl
from jax.experimental.pallas import tpu as pltpu

LANE = 128        # vreg lane width (last dim)
SUBLANE = 8       # vreg sublane count (second-to-last dim)
MXU_DTYPE = jnp.bfloat16     # matmul-operand dtype (f32 accumulation everywhere)
HIDDEN_DTYPE = jnp.bfloat16  # inter-layer hidden-state storage dtype
GATE_ORDER = (0, 1, 3, 2)    # PyTorch (i, f, g, o) -> kernel (i, f, o, g)
VMEM_LIMIT_BYTES = 32 * 1024 * 1024   # above v5e's 16 MiB scoped default, < v7x 64 MiB


def _round_up(n, m):
    return ((n + m - 1) // m) * m


def _choose_row_tile(m, max_rows=512):
    """Largest multiple of SUBLANE that divides m and is <= max_rows."""
    best = SUBLANE
    d = SUBLANE
    while d <= min(m, max_rows):
        if m % d == 0:
            best = d
        d += SUBLANE
    return best


# ----------------------------------------------------------------------------
# Kernel 1: sequence-parallel input projection for BOTH directions of a layer.
#   [gates_fwd | gates_bwd] = sum_i x_i @ W_i + [b_f | b_b]      (M, 8*Hp)
# W_i concatenates the fwd and bwd gate weights along N, so each input needs a
# single MXU dot; the output is split back into the two gate tensors in-kernel.
# Gridded over the M = T*Bp rows (parallel), weights/bias are grid-invariant.
# ----------------------------------------------------------------------------
def _proj_kernel(*refs):
    n = (len(refs) - 3) // 2
    x_refs = refs[:n]
    w_refs = refs[n:2 * n]
    b_ref, of_ref, ob_ref = refs[2 * n:]
    G = of_ref.shape[1]                       # 4 * Hp

    acc = b_ref[...]                          # (1, 8Hp) f32, broadcasts over rows
    for x_ref, w_ref in zip(x_refs, w_refs):
        xv = x_ref[...].astype(w_ref.dtype)   # cast to bf16 right before the dot
        acc = acc + jnp.dot(xv, w_ref[...], preferred_element_type=jnp.float32)
    of_ref[...] = acc[:, :G].astype(of_ref.dtype)
    ob_ref[...] = acc[:, G:].astype(ob_ref.dtype)


def project_inputs(xs, w_combs, b_comb, hp):
    """xs: list of (M, K_i). w_combs: list of (K_i, 8*Hp) bf16. b_comb: (1, 8*Hp) f32."""
    M = xs[0].shape[0]
    G = 4 * hp
    tile_m = _choose_row_tile(M)
    grid = (M // tile_m,)

    in_specs = []
    for x in xs:
        K = x.shape[1]
        in_specs.append(pl.BlockSpec((tile_m, K), lambda m: (m, 0)))
    for w in w_combs:
        K = w.shape[0]
        in_specs.append(pl.BlockSpec((K, 2 * G), lambda m: (0, 0)))   # grid-invariant
    in_specs.append(pl.BlockSpec((1, 2 * G), lambda m: (0, 0)))       # grid-invariant

    out_specs = (pl.BlockSpec((tile_m, G), lambda m: (m, 0)),
                 pl.BlockSpec((tile_m, G), lambda m: (m, 0)))

    return pl.pallas_call(
        _proj_kernel,
        out_shape=(jax.ShapeDtypeStruct((M, G), jnp.float32),
                   jax.ShapeDtypeStruct((M, G), jnp.float32)),
        grid=grid,
        in_specs=in_specs,
        out_specs=out_specs,
        compiler_params=pltpu.CompilerParams(
            dimension_semantics=("parallel",),
            vmem_limit_bytes=VMEM_LIMIT_BYTES,
        ),
    )(*xs, *w_combs, b_comb)


# ----------------------------------------------------------------------------
# LSTM cell, kernel gate order (i, f, o, g): one wide sigmoid + one tanh.
# gates_x already holds x @ W_ih^T + (b_ih + b_hh); pointwise math stays f32.
# ----------------------------------------------------------------------------
def _lstm_cell(gates_x, h_prev, c_prev, whh):
    Hp = whh.shape[0]
    gates = gates_x + jnp.dot(h_prev.astype(whh.dtype), whh,
                              preferred_element_type=jnp.float32)
    sg = jax.nn.sigmoid(gates[:, :3 * Hp])    # i, f, o in one EUP/VPU pass
    g = jnp.tanh(gates[:, 3 * Hp:])
    i = sg[:, 0 * Hp:1 * Hp]
    f = sg[:, 1 * Hp:2 * Hp]
    o = sg[:, 2 * Hp:3 * Hp]
    c = f * c_prev + i * g
    h = o * jnp.tanh(c)
    return h, c


def _lstm_cell_zero_state(gates_x, Hp):
    """First step of a direction (h_prev = c_prev = 0): no W_hh dot needed."""
    sg = jax.nn.sigmoid(gates_x[:, :3 * Hp])
    g = jnp.tanh(gates_x[:, 3 * Hp:])
    i = sg[:, 0 * Hp:1 * Hp]
    o = sg[:, 2 * Hp:3 * Hp]
    c = i * g
    return o * jnp.tanh(c)


# ----------------------------------------------------------------------------
# Kernel 2: fused bidirectional LSTM layer, recurrence only, GRIDLESS.
# Whole gate sequences + W_hh + carries live in VMEM; the time loop is an
# in-kernel fori_loop (unrolled for short T).  Backward direction reads its gates
# and writes its hiddens at reversed time indices -- no flip/concat HBM passes.
# ----------------------------------------------------------------------------
def _make_bilstm_layer_kernel(T, unroll):
    def kernel(gxf_ref, gxb_ref, whhf_ref, whhb_ref, hf_ref, hb_ref):
        Bp = gxf_ref.shape[1]
        Hp = whhf_ref.shape[0]
        whhf = whhf_ref[...]
        whhb = whhb_ref[...]
        zeros = jnp.zeros((Bp, Hp), jnp.float32)

        def step(t, carry):
            h_f, c_f, h_b, c_b = carry
            h_f, c_f = _lstm_cell(gxf_ref[t], h_f, c_f, whhf)
            h_b, c_b = _lstm_cell(gxb_ref[T - 1 - t], h_b, c_b, whhb)
            hf_ref[t] = h_f.astype(hf_ref.dtype)
            hb_ref[T - 1 - t] = h_b.astype(hb_ref.dtype)
            return h_f, c_f, h_b, c_b

        jax.lax.fori_loop(0, T, step, (zeros, zeros, zeros, zeros), unroll=unroll)

    return kernel


def bilstm_layer(gx_fwd, gx_bwd, whh_fwd, whh_bwd):
    T, Bp, _G = gx_fwd.shape
    Hp = whh_fwd.shape[0]
    vmem = pl.BlockSpec(memory_space=pltpu.MemorySpace.VMEM)
    kernel = _make_bilstm_layer_kernel(T, unroll=bool(T <= 16))
    # TODO(synk): on v7x the two directions could run on the two TensorCores.
    return pl.pallas_call(
        kernel,
        out_shape=(jax.ShapeDtypeStruct((T, Bp, Hp), HIDDEN_DTYPE),
                   jax.ShapeDtypeStruct((T, Bp, Hp), HIDDEN_DTYPE)),
        in_specs=[vmem] * 4,
        out_specs=(vmem, vmem),
        compiler_params=pltpu.CompilerParams(vmem_limit_bytes=VMEM_LIMIT_BYTES),
    )(gx_fwd, gx_bwd, whh_fwd, whh_bwd)


# ----------------------------------------------------------------------------
# Kernel 3: final bidirectional LSTM layer fused with the classifier head,
# GRIDLESS.  Only hdn[-1] is consumed downstream:
#   * forward direction: full T-step recurrence, keep only the final hidden;
#   * backward direction at real time T-1 is its FIRST step from zero state, so
#     it is a pointwise cell update on the single gates row for time T-1
#     (the h_prev @ W_hh term is exactly zero -- no recurrence, no W_hh).
# The Linear->Linear head runs on [h_fwd_last | h_bwd_last] with W1 split into
# halves so the (B, 2H) concat is never materialized; only (B, out) is stored.
# ----------------------------------------------------------------------------
def _make_head_kernel(T, unroll):
    def kernel(gxf_ref, gxb_last_ref, whhf_ref,
               w1f_ref, w1b_ref, b1_ref, w2_ref, b2_ref, out_ref):
        Bp = gxf_ref.shape[1]
        Hp = whhf_ref.shape[0]
        whhf = whhf_ref[...]
        zeros = jnp.zeros((Bp, Hp), jnp.float32)

        def step(t, carry):
            h_f, c_f = carry
            return _lstm_cell(gxf_ref[t], h_f, c_f, whhf)

        h_f, _ = jax.lax.fori_loop(0, T, step, (zeros, zeros), unroll=unroll)
        h_b = _lstm_cell_zero_state(gxb_last_ref[...], Hp)

        hid = (jnp.dot(h_f.astype(w1f_ref.dtype), w1f_ref[...],
                       preferred_element_type=jnp.float32)
               + jnp.dot(h_b.astype(w1b_ref.dtype), w1b_ref[...],
                         preferred_element_type=jnp.float32)
               + b1_ref[...])
        preds = jnp.dot(hid.astype(w2_ref.dtype), w2_ref[...],
                        preferred_element_type=jnp.float32) + b2_ref[...]
        out_ref[...] = preds.astype(out_ref.dtype)

    return kernel


def bilstm_last_layer_with_head(gx_fwd, gx_bwd_last, whh_fwd,
                                w1_top, w1_bot, b1, w2, b2):
    T, Bp, _G = gx_fwd.shape
    OutP = w2.shape[1]
    vmem = pl.BlockSpec(memory_space=pltpu.MemorySpace.VMEM)
    kernel = _make_head_kernel(T, unroll=bool(T <= 16))
    return pl.pallas_call(
        kernel,
        out_shape=jax.ShapeDtypeStruct((Bp, OutP), jnp.float32),
        in_specs=[vmem] * 8,
        out_specs=vmem,
        compiler_params=pltpu.CompilerParams(vmem_limit_bytes=VMEM_LIMIT_BYTES),
    )(gx_fwd, gx_bwd_last, whh_fwd, w1_top, w1_bot, b1, w2, b2)


# ----------------------------------------------------------------------------
# Parameters: PyTorch-layout f32 params (used by the pure-JAX reference) plus a
# preparation step that pads / reorders / transposes / casts to kernel layout.
# ----------------------------------------------------------------------------
def init_params(key, vocab_size, hidden_dim, emb_dim, out_dim):
    H = hidden_dim

    def u(k, shape, bound):
        return jax.random.uniform(k, shape, jnp.float32, -bound, bound)

    keys = jax.random.split(key, 32)
    ki = iter(range(32))
    p = {}
    # frozen "pretrained" embedding table
    p["emb"] = jax.random.normal(keys[next(ki)], (vocab_size, emb_dim), jnp.float32)

    k = 1.0 / float(H) ** 0.5
    lstm = []
    for layer in range(2):
        in_dim = emb_dim if layer == 0 else 2 * H
        dirs = []
        for _d in range(2):
            dirs.append(dict(
                w_ih=u(keys[next(ki)], (4 * H, in_dim), k),
                w_hh=u(keys[next(ki)], (4 * H, H), k),
                b_ih=u(keys[next(ki)], (4 * H,), k),
                b_hh=u(keys[next(ki)], (4 * H,), k),
            ))
        lstm.append(dirs)
    p["lstm"] = lstm

    kl = 1.0 / float(2 * H) ** 0.5
    p["w1"] = u(keys[next(ki)], (H, 2 * H), kl)
    p["b1"] = u(keys[next(ki)], (H,), kl)
    ko = 1.0 / float(H) ** 0.5
    p["w2"] = u(keys[next(ki)], (out_dim, H), ko)
    p["b2"] = u(keys[next(ki)], (out_dim,), ko)
    return p


def prepare_kernel_params(p, mxu_dtype=MXU_DTYPE):
    H = p["w1"].shape[0]
    E = p["emb"].shape[1]
    out_dim = p["w2"].shape[0]
    Hp = _round_up(H, LANE)
    Ep = _round_up(E, LANE)
    OutP = _round_up(out_dim, LANE)

    def pad_gates_t(w, in_p):
        # (4H, in) PyTorch layout -> (in_p, 4*Hp) transposed, gate order (i,f,o,g),
        # each gate block placed at offset g*Hp.  Zero padding keeps padded hidden
        # columns identically zero through the LSTM cell (exact).
        in_dim = w.shape[1]
        out = jnp.zeros((in_p, 4 * Hp), jnp.float32)
        for new_g, pt_g in enumerate(GATE_ORDER):
            out = out.at[:in_dim, new_g * Hp:new_g * Hp + H].set(
                w[pt_g * H:(pt_g + 1) * H, :].T)
        return out

    def pad_gate_bias(b):
        out = jnp.zeros((1, 4 * Hp), jnp.float32)
        for new_g, pt_g in enumerate(GATE_ORDER):
            out = out.at[0, new_g * Hp:new_g * Hp + H].set(b[pt_g * H:(pt_g + 1) * H])
        return out

    def pad_linear_t(w, in_p, out_p):
        o, i = w.shape
        m = jnp.zeros((in_p, out_p), jnp.float32)
        m = m.at[:i, :o].set(w.T)
        return m.astype(mxu_dtype)

    def comb(wf, wb):
        # concat fwd/bwd gate weights along N -> one (K, 8*Hp) MXU operand
        return jnp.concatenate([wf, wb], axis=1).astype(mxu_dtype)

    kp = {"H_p": Hp, "out_dim": out_dim}
    kp["emb"] = jnp.pad(p["emb"], ((0, 0), (0, Ep - E)))   # frozen table stays f32

    fwd0, bwd0 = p["lstm"][0]
    layer0 = dict(
        w_comb=[comb(pad_gates_t(fwd0["w_ih"], Ep), pad_gates_t(bwd0["w_ih"], Ep))],
        b_comb=jnp.concatenate([pad_gate_bias(fwd0["b_ih"] + fwd0["b_hh"]),
                                pad_gate_bias(bwd0["b_ih"] + bwd0["b_hh"])], axis=1),
        w_hh_f=pad_gates_t(fwd0["w_hh"], Hp).astype(mxu_dtype),
        w_hh_b=pad_gates_t(bwd0["w_hh"], Hp).astype(mxu_dtype),
    )

    fwd1, bwd1 = p["lstm"][1]
    # layer-2 input is [h_fwd, h_bwd]; W_ih split per input so the concat is never
    # materialized.  w_hh for the backward direction is NOT needed: only its first
    # (zero-state) step contributes to hdn[-1].
    layer1 = dict(
        w_comb=[comb(pad_gates_t(fwd1["w_ih"][:, :H], Hp),
                     pad_gates_t(bwd1["w_ih"][:, :H], Hp)),
                comb(pad_gates_t(fwd1["w_ih"][:, H:], Hp),
                     pad_gates_t(bwd1["w_ih"][:, H:], Hp))],
        b_comb=jnp.concatenate([pad_gate_bias(fwd1["b_ih"] + fwd1["b_hh"]),
                                pad_gate_bias(bwd1["b_ih"] + bwd1["b_hh"])], axis=1),
        w_hh_f=pad_gates_t(fwd1["w_hh"], Hp).astype(mxu_dtype),
    )
    kp["lstm"] = [layer0, layer1]

    kp["w1_top"] = pad_linear_t(p["w1"][:, :H], Hp, Hp)
    kp["w1_bot"] = pad_linear_t(p["w1"][:, H:], Hp, Hp)
    kp["b1"] = jnp.zeros((1, Hp), jnp.float32).at[0, :H].set(p["b1"])
    kp["w2"] = pad_linear_t(p["w2"], Hp, OutP)
    kp["b2"] = jnp.zeros((1, OutP), jnp.float32).at[0, :out_dim].set(p["b2"])
    return kp


# ----------------------------------------------------------------------------
# Full forward pass
# ----------------------------------------------------------------------------
def bilstm_forward(kp, seq):
    """seq: (T, B) int32 token ids (PyTorch LSTM default layout, batch_first=False)."""
    T, B = seq.shape
    Hp = kp["H_p"]
    Bp = _round_up(B, SUBLANE)

    # Embedding lookup (gather) stays in XLA glue; batch padded to a sublane
    # multiple (padded rows are independent and sliced away at the end).
    seq_p = jnp.pad(seq, ((0, 0), (0, Bp - B)))
    x = kp["emb"][seq_p]                                    # (T, Bp, Ep) f32
    Ep = x.shape[-1]

    # ---- layer 1: one parallel input projection (both directions), then the
    #      fused bidirectional recurrence (in-kernel time loop).
    l0 = kp["lstm"][0]
    gxf, gxb = project_inputs([x.reshape(T * Bp, Ep)], l0["w_comb"], l0["b_comb"], Hp)
    hf, hb = bilstm_layer(gxf.reshape(T, Bp, 4 * Hp), gxb.reshape(T, Bp, 4 * Hp),
                          l0["w_hh_f"], l0["w_hh_b"])       # bf16 hiddens
    # TODO(synk): nn.LSTM inter-layer dropout(p=0.1) is train-only; eval forward omits it.

    # ---- layer 2 (+ fused Linear->Linear classifier head).  Only hdn[-1] is
    #      consumed: full forward recurrence, backward contributes only its
    #      zero-state step on the time-(T-1) gates row.
    l1 = kp["lstm"][1]
    gxf2, gxb2 = project_inputs([hf.reshape(T * Bp, Hp), hb.reshape(T * Bp, Hp)],
                                l1["w_comb"], l1["b_comb"], Hp)
    gxf2 = gxf2.reshape(T, Bp, 4 * Hp)
    gxb2_last = gxb2.reshape(T, Bp, 4 * Hp)[T - 1]          # (Bp, 4*Hp)
    preds_p = bilstm_last_layer_with_head(
        gxf2, gxb2_last, l1["w_hh_f"],
        kp["w1_top"], kp["w1_bot"], kp["b1"], kp["w2"], kp["b2"])

    return preds_p[:B, :kp["out_dim"]]


# ----------------------------------------------------------------------------
# Pure-JAX f32 reference (PyTorch-layout params) for a numerical sanity check
# ----------------------------------------------------------------------------
def _lstm_dir_ref(x, d):
    H = d["w_hh"].shape[1]
    B = x.shape[1]
    w_ih_t = d["w_ih"].T
    w_hh_t = d["w_hh"].T
    bias = (d["b_ih"] + d["b_hh"])[None, :]

    def step(carry, x_t):
        h, c = carry
        gates = x_t @ w_ih_t + h @ w_hh_t + bias
        i = jax.nn.sigmoid(gates[:, 0 * H:1 * H])
        f = jax.nn.sigmoid(gates[:, 1 * H:2 * H])
        g = jnp.tanh(gates[:, 2 * H:3 * H])
        o = jax.nn.sigmoid(gates[:, 3 * H:4 * H])
        c = f * c + i * g
        h = o * jnp.tanh(c)
        return (h, c), h

    init = (jnp.zeros((B, H), jnp.float32), jnp.zeros((B, H), jnp.float32))
    _, hs = jax.lax.scan(step, init, x)
    return hs


def bilstm_forward_ref(p, seq):
    x = p["emb"][seq]
    for layer in range(2):
        fd, bd = p["lstm"][layer]
        h_f = _lstm_dir_ref(x, fd)
        h_b = jnp.flip(_lstm_dir_ref(jnp.flip(x, 0), bd), 0)
        x = jnp.concatenate([h_f, h_b], axis=-1)
    feature = x[-1]
    hid = feature @ p["w1"].T + p["b1"]
    return hid @ p["w2"].T + p["b2"]


if __name__ == "__main__":
    vocab_size, hidden_dim, emb_dim, out_dim = 50, 32, 16, 4
    T, B = 8, 2

    key = jax.random.PRNGKey(0)
    pkey, skey = jax.random.split(key)
    params = init_params(pkey, vocab_size, hidden_dim, emb_dim, out_dim)
    kparams = prepare_kernel_params(params)
    seq = jax.random.randint(skey, (T, B), 0, vocab_size, dtype=jnp.int32)

    preds = jax.block_until_ready(bilstm_forward(kparams, seq))
    assert preds.shape == (B, out_dim)
    assert bool(jnp.all(jnp.isfinite(preds)))

    ref = jax.block_until_ready(bilstm_forward_ref(params, seq))
    # bf16 MXU operands / bf16 inter-layer hiddens with f32 accumulation and f32
    # cell state: small drift vs the pure-f32 reference.
    assert bool(jnp.allclose(preds, ref, rtol=2e-2, atol=2e-2)), (preds, ref)

    print("KERNEL_OK")
</pallas_src>

<mosaic_0001>
module attributes {stable_mosaic.version = 11 : i64} {
  func.func @_proj_kernel(%arg0: i32, %arg1: memref<64x128xf32, #tpu.memory_space<vmem>>, %arg2: memref<128x1024xbf16, #tpu.memory_space<vmem>>, %arg3: memref<1x1024xf32, #tpu.memory_space<vmem>>, %arg4: memref<64x512xf32, #tpu.memory_space<vmem>>, %arg5: memref<64x512xf32, #tpu.memory_space<vmem>>) attributes {dimension_semantics = [#tpu.dimension_semantics<parallel>], iteration_bounds = array<i64: 1>, scalar_prefetch = 0 : i64, scratch_operands = 0 : i64, tpu.core_type = #tpu.core_type<tc>, window_params = [{transform_indices = @transform_0, window_bounds = array<i64: 64, 128>}, {pipeline_mode = #tpu.pipeline_mode<synchronous>, transform_indices = @transform_1, window_bounds = array<i64: 128, 1024>}, {pipeline_mode = #tpu.pipeline_mode<synchronous>, transform_indices = @transform_2, window_bounds = array<i64: 1, 1024>}, {transform_indices = @transform_3, window_bounds = array<i64: 64, 512>}, {transform_indices = @transform_4, window_bounds = array<i64: 64, 512>}]} {
    %c0 = arith.constant 0 : index
    %c0_0 = arith.constant 0 : index
    %0 = vector.load %arg3[%c0, %c0_0] : memref<1x1024xf32, #tpu.memory_space<vmem>>, vector<1x1024xf32>
    %c0_1 = arith.constant 0 : index
    %c0_2 = arith.constant 0 : index
    %1 = vector.load %arg1[%c0_1, %c0_2] : memref<64x128xf32, #tpu.memory_space<vmem>>, vector<64x128xf32>
    %2 = arith.truncf %1 : vector<64x128xf32> to vector<64x128xbf16>
    %c0_3 = arith.constant 0 : index
    %c0_4 = arith.constant 0 : index
    %3 = vector.load %arg2[%c0_3, %c0_4] : memref<128x1024xbf16, #tpu.memory_space<vmem>>, vector<128x1024xbf16>
    %cst = arith.constant dense<0.000000e+00> : vector<64x1024xf32>
    %4 = tpu.matmul %2, %3, %cst {dimension_numbers = #tpu.dot_dimension_numbers<[1], [0], [0], [1], [0, 0, 1, 1], [], []>} : vector<64x128xbf16>, vector<128x1024xbf16>, vector<64x1024xf32> -> vector<64x1024xf32>
    %5 = vector.broadcast %0 : vector<1x1024xf32> to vector<64x1024xf32>
    %6 = arith.addf %5, %4 : vector<64x1024xf32>
    %7 = vector.extract_strided_slice %6 {offsets = [0, 0], sizes = [64, 512], strides = [1, 1]} : vector<64x1024xf32> to vector<64x512xf32>
    %c0_5 = arith.constant 0 : index
    %c0_6 = arith.constant 0 : index
    %8 = vector.load %arg4[%c0_5, %c0_6] : memref<64x512xf32, #tpu.memory_space<vmem>>, vector<64x512xf32>
    tpu.vector_store %arg4[%c0_5, %c0_6], %7 {strides = array<i32>} : memref<64x512xf32, #tpu.memory_space<vmem>>, vector<64x512xf32>,
    %9 = vector.extract_strided_slice %6 {offsets = [0, 512], sizes = [64, 512], strides = [1, 1]} : vector<64x1024xf32> to vector<64x512xf32>
    %c0_7 = arith.constant 0 : index
    %c0_8 = arith.constant 0 : index
    %10 = vector.load %arg5[%c0_7, %c0_8] : memref<64x512xf32, #tpu.memory_space<vmem>>, vector<64x512xf32>
    tpu.vector_store %arg5[%c0_7, %c0_8], %9 {strides = array<i32>} : memref<64x512xf32, #tpu.memory_space<vmem>>, vector<64x512xf32>,
    return
  }
  func.func @transform_0(%arg0: i32) -> (i32, i32) {
    %c0_i32 = arith.constant 0 : i32
    %c0_i32_0 = arith.constant 0 : i32
    return %arg0, %c0_i32 : i32, i32
  }
  func.func @transform_1(%arg0: i32) -> (i32, i32) {
    %c0_i32 = arith.constant 0 : i32
    %c0_i32_0 = arith.constant 0 : i32
    %c0_i32_1 = arith.constant 0 : i32
    return %c0_i32, %c0_i32_0 : i32, i32
  }
  func.func @transform_2(%arg0: i32) -> (i32, i32) {
    %c0_i32 = arith.constant 0 : i32
    %c0_i32_0 = arith.constant 0 : i32
    %c0_i32_1 = arith.constant 0 : i32
    return %c0_i32, %c0_i32_0 : i32, i32
  }
  func.func @transform_3(%arg0: i32) -> (i32, i32) {
    %c0_i32 = arith.constant 0 : i32
    %c0_i32_0 = arith.constant 0 : i32
    return %arg0, %c0_i32 : i32, i32
  }
  func.func @transform_4(%arg0: i32) -> (i32, i32) {
    %c0_i32 = arith.constant 0 : i32
    %c0_i32_0 = arith.constant 0 : i32
    return %arg0, %c0_i32 : i32, i32
  }
}

</mosaic_0001>

<llo_original>
// kernel: tpu_custom_call.1
$region0: #{tpu_custom_call.1}
  #allocation0 [shape = 'u32[]', space=smem, size = 0x4, offset = 0x4, fixed_abs, tag = 'smem constant byte address 0x4 - core index']
  #allocation1 [shape = 'u32[144,128]{1,0:T(1,128)}', space=vmem, size = 0x12000, scoped, tag = 'internal scratch']
  %s0 = inlined_call_operand.hbm [shape: f32[64,128], index: 0, kind: input, shape index: {}]
  %s1 = inlined_call_operand.hbm [shape: bf16[128,1024], index: 1, kind: input, shape index: {}]
  %s2 = inlined_call_operand.hbm [shape: f32[1,1024], index: 2, kind: input, shape index: {}]
  %s3 = inlined_call_operand.hbm [shape: f32[64,512], index: 3, kind: output, shape index: {0}]
  %s4 = inlined_call_operand.hbm [shape: f32[64,512], index: 4, kind: output, shape index: {1}]
  %5 = xla_tuple %s3, %s4
  %s6 = sld [smem:[#allocation0]]
  $region42: #{tpu_custom_call.1} parent=0
    _
  %s8 = ssub.s32 1, %s6
  %s9 = scalar_select 0, %s8, %s6
  $region1: #{tpu_custom_call.1} parent=0
    #allocation2 [shape = 'u8[32768]{0}', space=vmem, size = 0x8000, scoped, tag = 'input window, operand 0, single buffered']
    #allocation3 [shape = 's32[1]{0}', space=sflag, size = 0x4, scoped, tag = 'scoped memory for tpu_custom_call.1']
    #allocation4 [shape = 's32[1]{0}', space=sflag, size = 0x4, scoped, tag = 'scoped memory for tpu_custom_call.1']
    #allocation5 [shape = 'u8[262144]{0}', space=vmem, size = 0x40000, scoped, tag = 'input window, operand 1, single buffered']
    #allocation6 [shape = 's32[1]{0}', space=sflag, size = 0x4, scoped, tag = 'scoped memory for tpu_custom_call.1']
    #allocation7 [shape = 'u8[4096]{0}', space=vmem, size = 0x1000, scoped, tag = 'input window, operand 2, single buffered']
    #allocation8 [shape = 'u8[131072]{0}', space=vmem, size = 0x20000, scoped, tag = 'output window, operand 0, single buffered']
    #allocation9 [shape = 'u8[131072]{0}', space=vmem, size = 0x20000, scoped, tag = 'output window, operand 1, single buffered']
    #allocation10 [shape = 's32[1]{0}', space=sflag, size = 0x4, scoped, tag = 'scoped memory for tpu_custom_call.1']
    %10 = vsyncpa [#allocation3], 0
    %11 = vsyncpa [#allocation6], 0
    %12 = vsyncpa [#allocation4], 0
    %13 = vsyncpa [#allocation10], 0
    // Predicated region
    $region2: #{tpu_custom_call.1} parent=1 // pred_check
      _
    $region3: #{tpu_custom_call.1} parent=1 // pred_check_branch
      %15 = sbr.rel (0) target = $region5
    $region4: #{tpu_custom_call.1} parent=1 // pred_region
      %s17 = ssub.s32 1024, 1024
      %18 = vsyncadd [#allocation3], %s17
      %s19 = sshll.u32 [#allocation2], 4
      %s20 = int_to_ptr.vmem [resolvable:$true] %s19
      %25 = dma.hbm_to_vmem [thread:$0]  %s0, 1024, %s20, [#allocation3], 128, 128, 8
    $region5: #{tpu_custom_call.1} parent=1 // pred_fallthru
      _
    // Predicated region
    $region6: #{tpu_custom_call.1} parent=1 // pred_check
      _
    $region7: #{tpu_custom_call.1} parent=1 // pred_check_branch
      %27 = sbr.rel (0) target = $region9
    $region8: #{tpu_custom_call.1} parent=1 // pred_region
      %s29 = ssub.s32 8192, 8192
      %30 = vsyncadd [#allocation6], %s29
      %s31 = sshll.u32 [#allocation5], 4
      %s32 = int_to_ptr.vmem [resolvable:$true] %s31
      %37 = dma.hbm_to_vmem [thread:$0]  %s1, 8192, %s32, [#allocation6], 512, 512, 32
    $region9: #{tpu_custom_call.1} parent=1 // pred_fallthru
      _
    // Predicated region
    $region10: #{tpu_custom_call.1} parent=1 // pred_check
      _
    $region11: #{tpu_custom_call.1} parent=1 // pred_check_branch
      %39 = sbr.rel (0) target = $region13
    $region12: #{tpu_custom_call.1} parent=1 // pred_region
      %s41 = ssub.s32 128, 128
      %42 = vsyncadd [#allocation6], %s41
      %s44 = sshll.u32 [#allocation7], 4
      %s45 = int_to_ptr.vmem [resolvable:$true] %s44
      %47 = dma.hbm_to_vmem [thread:$0]  %s2, 128, %s45, [#allocation6]
    $region13: #{tpu_custom_call.1} parent=1 // pred_fallthru
      _
    // Predicated region
    $region14: #{tpu_custom_call.1} parent=1 // pred_check
      _
    $region15: #{tpu_custom_call.1} parent=1 // pred_check_branch
      %49 = sbr.rel (0) target = $region17
    $region16: #{tpu_custom_call.1} parent=1 // pred_region
      %50 = dma.done [#allocation3], 1024
    $region17: #{tpu_custom_call.1} parent=1 // pred_fallthru
      _
    // Predicated region
    $region18: #{tpu_custom_call.1} parent=1 // pred_check
      _
    $region19: #{tpu_custom_call.1} parent=1 // pred_check_branch
      %52 = sbr.rel (0) target = $region21
    $region20: #{tpu_custom_call.1} parent=1 // pred_region
      %53 = dma.done [#allocation6], 8192
    $region21: #{tpu_custom_call.1} parent=1 // pred_fallthru
      _
    // Predicated region
    $region22: #{tpu_custom_call.1} parent=1 // pred_check
      _
    $region23: #{tpu_custom_call.1} parent=1 // pred_check_branch
      %55 = sbr.rel (0) target = $region25
    $region24: #{tpu_custom_call.1} parent=1 // pred_region
      %56 = dma.done [#allocation6], 128
    $region25: #{tpu_custom_call.1} parent=1 // pred_fallthru
      _
    %v58 = vld [vmem:[#allocation7] sm:$0xff]
    %v59 = vld [vmem:[#allocation2] sm:$0xff]
    %v60 = vld [vmem:[#allocation2 + $0x8] sm:$0xff]
    %v61 = vld [vmem:[#allocation2 + $0x10] sm:$0xff]
    %v62 = vld [vmem:[#allocation2 + $0x18] sm:$0xff]
    %v63 = vld [vmem:[#allocation2 + $0x20] sm:$0xff]
    %v64 = vld [vmem:[#allocation2 + $0x28] sm:$0xff]
    %v65 = vld [vmem:[#allocation2 + $0x30] sm:$0xff]
    %v66 = vld [vmem:[#allocation2 + $0x38] sm:$0xff]
    %v67 = vpack.c.bf16 %v60, %v59
    %v68 = vpack.c.bf16 %v62, %v61
    %v69 = vpack.c.bf16 %v64, %v63
    %v70 = vpack.c.bf16 %v66, %v65
    %v71 = vld [vmem:[#allocation5] sm:$0xff]
    %v72 = vld [vmem:[#allocation5 + $0x8] sm:$0xff]
    %v73 = vld [vmem:[#allocation5 + $0x10] sm:$0xff]
    %v74 = vld [vmem:[#allocation5 + $0x18] sm:$0xff]
    %v75 = vld [vmem:[#allocation5 + $0x20] sm:$0xff]
    %v76 = vld [vmem:[#allocation5 + $0x28] sm:$0xff]
    %v77 = vld [vmem:[#allocation5 + $0x30] sm:$0xff]
    %v78 = vld [vmem:[#allocation5 + $0x38] sm:$0xff]
    %v79 = vld [vmem:[#allocation5 + $0x40] sm:$0xff]
    %v80 = vld [vmem:[#allocation5 + $0x48] sm:$0xff]
    %v81 = vld [vmem:[#allocation5 + $0x50] sm:$0xff]
    %v82 = vld [vmem:[#allocation5 + $0x58] sm:$0xff]
    %v83 = vld [vmem:[#allocation5 + $0x60] sm:$0xff]
    %v84 = vld [vmem:[#allocation5 + $0x68] sm:$0xff]
    %v85 = vld [vmem:[#allocation5 + $0x70] sm:$0xff]
    %v86 = vld [vmem:[#allocation5 + $0x78] sm:$0xff]
    %v87 = vld [vmem:[#allocation5 + $0x80] sm:$0xff]
    %v88 = vld [vmem:[#allocation5 + $0x88] sm:$0xff]
    %v89 = vld [vmem:[#allocation5 + $0x90] sm:$0xff]
    %v90 = vld [vmem:[#allocation5 + $0x98] sm:$0xff]
    %v91 = vld [vmem:[#allocation5 + $0xa0] sm:$0xff]
    %v92 = vld [vmem:[#allocation5 + $0xa8] sm:$0xff]
    %v93 = vld [vmem:[#allocation5 + $0xb0] sm:$0xff]
    %v94 = vld [vmem:[#allocation5 + $0xb8] sm:$0xff]
    %v95 = vld [vmem:[#allocation5 + $0xc0] sm:$0xff]
    %v96 = vld [vmem:[#allocation5 + $0xc8] sm:$0xff]
    %v97 = vld [vmem:[#allocation5 + $0xd0] sm:$0xff]
    %v98 = vld [vmem:[#allocation5 + $0xd8] sm:$0xff]
    %v99 = vld [vmem:[#allocation5 + $0xe0] sm:$0xff]
    %v100 = vld [vmem:[#allocation5 + $0xe8] sm:$0xff]
    %v101 = vld [vmem:[#allocation5 + $0xf0] sm:$0xff]
    %v102 = vld [vmem:[#allocation5 + $0xf8] sm:$0xff]
    %v103 = vld [vmem:[#allocation5 + $0x100] sm:$0xff]
    %v104 = vld [vmem:[#allocation5 + $0x108] sm:$0xff]
    %v105 = vld [vmem:[#allocation5 + $0x110] sm:$0xff]
    %v106 = vld [vmem:[#allocation5 + $0x118] sm:$0xff]
    %v107 = vld [vmem:[#allocation5 + $0x120] sm:$0xff]
    %v108 = vld [vmem:[#allocation5 + $0x128] sm:$0xff]
    %v109 = vld [vmem:[#allocation5 + $0x130] sm:$0xff]
    %v110 = vld [vmem:[#allocation5 + $0x138] sm:$0xff]
    %v111 = vld [vmem:[#allocation5 + $0x140] sm:$0xff]
    %v112 = vld [vmem:[#allocation5 + $0x148] sm:$0xff]
    %v113 = vld [vmem:[#allocation5 + $0x150] sm:$0xff]
    %v114 = vld [vmem:[#allocation5 + $0x158] sm:$0xff]
    %v115 = vld [vmem:[#allocation5 + $0x160] sm:$0xff]
    %v116 = vld [vmem:[#allocation5 + $0x168] sm:$0xff]
    %v117 = vld [vmem:[#allocation5 + $0x170] sm:$0xff]
    %v118 = vld [vmem:[#allocation5 + $0x178] sm:$0xff]
    %v119 = vld [vmem:[#allocation5 + $0x180] sm:$0xff]
    %v120 = vld [vmem:[#allocation5 + $0x188] sm:$0xff]
    %v121 = vld [vmem:[#allocation5 + $0x190] sm:$0xff]
    %v122 = vld [vmem:[#allocation5 + $0x198] sm:$0xff]
    %v123 = vld [vmem:[#allocation5 + $0x1a0] sm:$0xff]
    %v124 = vld [vmem:[#allocation5 + $0x1a8] sm:$0xff]
    %v125 = vld [vmem:[#allocation5 + $0x1b0] sm:$0xff]
    %v126 = vld [vmem:[#allocation5 + $0x1b8] sm:$0xff]
    %v127 = vld [vmem:[#allocation5 + $0x1c0] sm:$0xff]
    %v128 = vld [vmem:[#allocation5 + $0x1c8] sm:$0xff]
    %v129 = vld [vmem:[#allocation5 + $0x1d0] sm:$0xff]
    %v130 = vld [vmem:[#allocation5 + $0x1d8] sm:$0xff]
    %v131 = vld [vmem:[#allocation5 + $0x1e0] sm:$0xff]
    %v132 = vld [vmem:[#allocation5 + $0x1e8] sm:$0xff]
    %v133 = vld [vmem:[#allocation5 + $0x1f0] sm:$0xff]
    %v134 = vld [vmem:[#allocation5 + $0x1f8] sm:$0xff]
    %v199 = vunpack.c.l.b16 %v71
    %v200 = vunpack.c.h.b16 %v71
    %v201 = vunpack.c.l.b16 %v72
    %v202 = vunpack.c.h.b16 %v72
    %v203 = vunpack.c.l.b16 %v73
    %v204 = vunpack.c.h.b16 %v73
    %v205 = vunpack.c.l.b16 %v74
    %v206 = vunpack.c.h.b16 %v74
    %v207 = vunpack.c.l.b16 %v75
    %v208 = vunpack.c.h.b16 %v75
    %v209 = vunpack.c.l.b16 %v76
    %v210 = vunpack.c.h.b16 %v76
    %v211 = vunpack.c.l.b16 %v77
    %v212 = vunpack.c.h.b16 %v77
    %v213 = vunpack.c.l.b16 %v78
    %v214 = vunpack.c.h.b16 %v78
    %v215 = vunpack.c.l.b16 %v79
    %v216 = vunpack.c.h.b16 %v79
    %v217 = vunpack.c.l.b16 %v80
    %v218 = vunpack.c.h.b16 %v80
    %v219 = vunpack.c.l.b16 %v81
    %v220 = vunpack.c.h.b16 %v81
    %v221 = vunpack.c.l.b16 %v82
    %v222 = vunpack.c.h.b16 %v82
    %v223 = vunpack.c.l.b16 %v83
    %v224 = vunpack.c.h.b16 %v83
    %v225 = vunpack.c.l.b16 %v84
    %v226 = vunpack.c.h.b16 %v84
    %v227 = vunpack.c.l.b16 %v85
    %v228 = vunpack.c.h.b16 %v85
    %v229 = vunpack.c.l.b16 %v86
    %v230 = vunpack.c.h.b16 %v86
    %v231 = vunpack.c.l.b16 %v87
    %v232 = vunpack.c.h.b16 %v87
    %v233 = vunpack.c.l.b16 %v88
    %v234 = vunpack.c.h.b16 %v88
    %v235 = vunpack.c.l.b16 %v89
    %v236 = vunpack.c.h.b16 %v89
    %v237 = vunpack.c.l.b16 %v90
    %v238 = vunpack.c.h.b16 %v90
    %v239 = vunpack.c.l.b16 %v91
    %v240 = vunpack.c.h.b16 %v91
    %v241 = vunpack.c.l.b16 %v92
    %v242 = vunpack.c.h.b16 %v92
    %v243 = vunpack.c.l.b16 %v93
    %v244 = vunpack.c.h.b16 %v93
    %v245 = vunpack.c.l.b16 %v94
    %v246 = vunpack.c.h.b16 %v94
    %v247 = vunpack.c.l.b16 %v95
    %v248 = vunpack.c.h.b16 %v95
    %v249 = vunpack.c.l.b16 %v96
    %v250 = vunpack.c.h.b16 %v96
    %v251 = vunpack.c.l.b16 %v97
    %v252 = vunpack.c.h.b16 %v97
    %v253 = vunpack.c.l.b16 %v98
    %v254 = vunpack.c.h.b16 %v98
    %v255 = vunpack.c.l.b16 %v99
    %v256 = vunpack.c.h.b16 %v99
    %v257 = vunpack.c.l.b16 %v100
    %v258 = vunpack.c.h.b16 %v100
    %v259 = vunpack.c.l.b16 %v101
    %v260 = vunpack.c.h.b16 %v101
    %v261 = vunpack.c.l.b16 %v102
    %v262 = vunpack.c.h.b16 %v102
    %v263 = vunpack.c.l.b16 %v103
    %v264 = vunpack.c.h.b16 %v103
    %v265 = vunpack.c.l.b16 %v104
    %v266 = vunpack.c.h.b16 %v104
    %v267 = vunpack.c.l.b16 %v105
    %v268 = vunpack.c.h.b16 %v105
    %v269 = vunpack.c.l.b16 %v106
    %v270 = vunpack.c.h.b16 %v106
    %v271 = vunpack.c.l.b16 %v107
    %v272 = vunpack.c.h.b16 %v107
    %v273 = vunpack.c.l.b16 %v108
    %v274 = vunpack.c.h.b16 %v108
    %v275 = vunpack.c.l.b16 %v109
    %v276 = vunpack.c.h.b16 %v109
    %v277 = vunpack.c.l.b16 %v110
    %v278 = vunpack.c.h.b16 %v110
    %v279 = vunpack.c.l.b16 %v111
    %v280 = vunpack.c.h.b16 %v111
    %v281 = vunpack.c.l.b16 %v112
    %v282 = vunpack.c.h.b16 %v112
    %v283 = vunpack.c.l.b16 %v113
    %v284 = vunpack.c.h.b16 %v113
    %v285 = vunpack.c.l.b16 %v114
    %v286 = vunpack.c.h.b16 %v114
    %v287 = vunpack.c.l.b16 %v115
    %v288 = vunpack.c.h.b16 %v115
    %v289 = vunpack.c.l.b16 %v116
    %v290 = vunpack.c.h.b16 %v116
    %v291 = vunpack.c.l.b16 %v117
    %v292 = vunpack.c.h.b16 %v117
    %v293 = vunpack.c.l.b16 %v118
    %v294 = vunpack.c.h.b16 %v118
    %v295 = vunpack.c.l.b16 %v119
    %v296 = vunpack.c.h.b16 %v119
    %v297 = vunpack.c.l.b16 %v120
    %v298 = vunpack.c.h.b16 %v120
    %v299 = vunpack.c.l.b16 %v121
    %v300 = vunpack.c.h.b16 %v121
    %v301 = vunpack.c.l.b16 %v122
    %v302 = vunpack.c.h.b16 %v122
    %v303 = vunpack.c.l.b16 %v123
    %v304 = vunpack.c.h.b16 %v123
    %v305 = vunpack.c.l.b16 %v124
    %v306 = vunpack.c.h.b16 %v124
    %v307 = vunpack.c.l.b16 %v125
    %v308 = vunpack.c.h.b16 %v125
    %v309 = vunpack.c.l.b16 %v126
    %v310 = vunpack.c.h.b16 %v126
    %v311 = vunpack.c.l.b16 %v127
    %v312 = vunpack.c.h.b16 %v127
    %v313 = vunpack.c.l.b16 %v128
    %v314 = vunpack.c.h.b16 %v128
    %v315 = vunpack.c.l.b16 %v129
    %v316 = vunpack.c.h.b16 %v129
    %v317 = vunpack.c.l.b16 %v130
    %v318 = vunpack.c.h.b16 %v130
    %v319 = vunpack.c.l.b16 %v131
    %v320 = vunpack.c.h.b16 %v131
    %v321 = vunpack.c.l.b16 %v132
    %v322 = vunpack.c.h.b16 %v132
    %v323 = vunpack.c.l.b16 %v133
    %v324 = vunpack.c.h.b16 %v133
    %v325 = vunpack.c.l.b16 %v134
    %v326 = vunpack.c.h.b16 %v134
    %v327 = vpack.c.b16 %v207, %v199
    %v328 = vpack.c.b16 %v208, %v200
    %v329 = vpack.c.b16 %v209, %v201
    %v330 = vpack.c.b16 %v210, %v202
    %v331 = vpack.c.b16 %v211, %v203
    %v332 = vpack.c.b16 %v212, %v204
    %v333 = vpack.c.b16 %v213, %v205
    %v334 = vpack.c.b16 %v214, %v206
    %v335 = vpack.c.b16 %v223, %v215
    %v336 = vpack.c.b16 %v224, %v216
    %v337 = vpack.c.b16 %v225, %v217
    %v338 = vpack.c.b16 %v226, %v218
    %v339 = vpack.c.b16 %v227, %v219
    %v340 = vpack.c.b16 %v228, %v220
    %v341 = vpack.c.b16 %v229, %v221
    %v342 = vpack.c.b16 %v230, %v222
    %v343 = vpack.c.b16 %v239, %v231
    %v344 = vpack.c.b16 %v240, %v232
    %v345 = vpack.c.b16 %v241, %v233
    %v346 = vpack.c.b16 %v242, %v234
    %v347 = vpack.c.b16 %v243, %v235
    %v348 = vpack.c.b16 %v244, %v236
    %v349 = vpack.c.b16 %v245, %v237
    %v350 = vpack.c.b16 %v246, %v238
    %v351 = vpack.c.b16 %v255, %v247
    %v352 = vpack.c.b16 %v256, %v248
    %v353 = vpack.c.b16 %v257, %v249
    %v354 = vpack.c.b16 %v258, %v250
    %v355 = vpack.c.b16 %v259, %v251
    %v356 = vpack.c.b16 %v260, %v252
    %v357 = vpack.c.b16 %v261, %v253
    %v358 = vpack.c.b16 %v262, %v254
    %v359 = vpack.c.b16 %v271, %v263
    %v360 = vpack.c.b16 %v272, %v264
    %v361 = vpack.c.b16 %v273, %v265
    %v362 = vpack.c.b16 %v274, %v266
    %v363 = vpack.c.b16 %v275, %v267
    %v364 = vpack.c.b16 %v276, %v268
    %v365 = vpack.c.b16 %v277, %v269
    %v366 = vpack.c.b16 %v278, %v270
    %v367 = vpack.c.b16 %v287, %v279
    %v368 = vpack.c.b16 %v288, %v280
    %v369 = vpack.c.b16 %v289, %v281
    %v370 = vpack.c.b16 %v290, %v282
    %v371 = vpack.c.b16 %v291, %v283
    %v372 = vpack.c.b16 %v292, %v284
    %v373 = vpack.c.b16 %v293, %v285
    %v374 = vpack.c.b16 %v294, %v286
    %v375 = vpack.c.b16 %v303, %v295
    %v376 = vpack.c.b16 %v304, %v296
    %v377 = vpack.c.b16 %v305, %v297
    %v378 = vpack.c.b16 %v306, %v298
    %v379 = vpack.c.b16 %v307, %v299
    %v380 = vpack.c.b16 %v308, %v300
    %v381 = vpack.c.b16 %v309, %v301
    %v382 = vpack.c.b16 %v310, %v302
    %v383 = vpack.c.b16 %v319, %v311
    %v384 = vpack.c.b16 %v320, %v312
    %v385 = vpack.c.b16 %v321, %v313
    %v386 = vpack.c.b16 %v322, %v314
    %v387 = vpack.c.b16 %v323, %v315
    %v388 = vpack.c.b16 %v324, %v316
    %v389 = vpack.c.b16 %v325, %v317
    %v390 = vpack.c.b16 %v326, %v318
    %455 = vmatprep.subr.bf16.mxu0 %v328
    %456 = vmatpush1.bf16.msra.mxu0 %v327
    %457 = vmatprep.subr.bf16.mxu0 %v336
    %458 = vmatpush1.bf16.msra.mxu0 %v335
    %459 = vmatprep.subr.bf16.mxu0 %v344
    %460 = vmatpush1.bf16.msra.mxu0 %v343
    %461 = vmatprep.subr.bf16.mxu0 %v352
    %462 = vmatpush1.bf16.msra.mxu0 %v351
    %463 = vmatprep.subr.bf16.mxu0 %v360
    %464 = vmatpush1.bf16.msra.mxu0 %v359
    %465 = vmatprep.subr.bf16.mxu0 %v368
    %466 = vmatpush1.bf16.msra.mxu0 %v367
    %467 = vmatprep.subr.bf16.mxu0 %v376
    %468 = vmatpush1.bf16.msra.mxu0 %v375
    %469 = vmatprep.subr.bf16.mxu0 %v384
    %470 = vmatpush1.bf16.msra.mxu0 %v383
    %471 = vmatprep.subr.bf16.mxu0 0
    %472 = vmatpush1.bf16.msra.mxu0 0
    %473 = vmatprep.subr.bf16.mxu0 0
    %474 = vmatpush1.bf16.msra.mxu0 0
    %475 = vmatprep.subr.bf16.mxu0 0
    %476 = vmatpush1.bf16.msra.mxu0 0
    %477 = vmatprep.subr.bf16.mxu0 0
    %478 = vmatpush1.bf16.msra.mxu0 0
    %479 = vmatprep.subr.bf16.mxu0 0
    %480 = vmatpush1.bf16.msra.mxu0 0
    %481 = vmatprep.subr.bf16.mxu0 0
    %482 = vmatpush1.bf16.msra.mxu0 0
    %483 = vmatprep.subr.bf16.mxu0 0
    %484 = vmatpush1.bf16.msra.mxu0 0
    %485 = vmatprep.subr.bf16.mxu0 0
    %486 = vmatpush1.bf16.msra.mxu0 0
    %487 = vmatprep.mubr.bf16.mxu0 0
    %488 = vmatmul.mubr.bf16.gmra.mrb[0].mxu0 %v67
    %v489 = vpop.f32.mrb[0].mxu0
    %v490 = vadd.f32 0.0, %v489
    %v491 = vpop.f32.mrb[0].mxu0
    %v492 = vadd.f32 0.0, %v491
    %v493 = vpop.f32.mrb[0].mxu0
    %v494 = vadd.f32 0.0, %v493
    %v495 = vpop.f32.mrb[0].mxu0
    %v496 = vadd.f32 0.0, %v495
    %497 = vmatprep.mubr.bf16.mxu0 0
    %498 = vmatmul.mubr.bf16.gmra.mrb[0].mxu0 %v68
    %v499 = vpop.f32.mrb[0].mxu0
    %v500 = vadd.f32 0.0, %v499
    %v501 = vpop.f32.mrb[0].mxu0
    %v502 = vadd.f32 0.0, %v501
    %v503 = vpop.f32.mrb[0].mxu0
    %v504 = vadd.f32 0.0, %v503
    %v505 = vpop.f32.mrb[0].mxu0
    %v506 = vadd.f32 0.0, %v505
    %507 = vmatprep.mubr.bf16.mxu0 0
    %508 = vmatmul.mubr.bf16.gmra.mrb[0].mxu0 %v69
    %v509 = vpop.f32.mrb[0].mxu0
    %v510 = vadd.f32 0.0, %v509
    %v511 = vpop.f32.mrb[0].mxu0
    %v512 = vadd.f32 0.0, %v511
    %v513 = vpop.f32.mrb[0].mxu0
    %v514 = vadd.f32 0.0, %v513
    %v515 = vpop.f32.mrb[0].mxu0
    %v516 = vadd.f32 0.0, %v515
    %517 = vmatprep.mubr.bf16.mxu0 0
    %518 = vmatmul.mubr.bf16.gmra.mrb[0].mxu0 %v70
    %v519 = vpop.f32.mrb[0].mxu0
    %v520 = vadd.f32 0.0, %v519
    %v521 = vpop.f32.mrb[0].mxu0
    %v522 = vadd.f32 0.0, %v521
    %v523 = vpop.f32.mrb[0].mxu0
    %v524 = vadd.f32 0.0, %v523
    %v525 = vpop.f32.mrb[0].mxu0
    %v526 = vadd.f32 0.0, %v525
    %527 = vdwg.mxu0
    %528 = vmatprep.subr.bf16.mxu0 %v330
    %529 = vmatpush1.bf16.msra.mxu0 %v329
    %530 = vmatprep.subr.bf16.mxu0 %v338
    %531 = vmatpush1.bf16.msra.mxu0 %v337
    %532 = vmatprep.subr.bf16.mxu0 %v346
    %533 = vmatpush1.bf16.msra.mxu0 %v345
    %534 = vmatprep.subr.bf16.mxu0 %v354
    %535 = vmatpush1.bf16.msra.mxu0 %v353
    %536 = vmatprep.subr.bf16.mxu0 %v362
    %537 = vmatpush1.bf16.msra.mxu0 %v361
    %538 = vmatprep.subr.bf16.mxu0 %v370
    %539 = vmatpush1.bf16.msra.mxu0 %v369
    %540 = vmatprep.subr.bf16.mxu0 %v378
    %541 = vmatpush1.bf16.msra.mxu0 %v377
    %542 = vmatprep.subr.bf16.mxu0 %v386
    %543 = vmatpush1.bf16.msra.mxu0 %v385
    %544 = vmatprep.subr.bf16.mxu0 0
    %545 = vmatpush1.bf16.msra.mxu0 0
    %546 = vmatprep.subr.bf16.mxu0 0
    %547 = vmatpush1.bf16.msra.mxu0 0
    %548 = vmatprep.subr.bf16.mxu0 0
    %549 = vmatpush1.bf16.msra.mxu0 0
    %550 = vmatprep.subr.bf16.mxu0 0
    %551 = vmatpush1.bf16.msra.mxu0 0
    %552 = vmatprep.subr.bf16.mxu0 0
    %553 = vmatpush1.bf16.msra.mxu0 0
    %554 = vmatprep.subr.bf16.mxu0 0
    %555 = vmatpush1.bf16.msra.mxu0 0
    %556 = vmatprep.subr.bf16.mxu0 0
    %557 = vmatpush1.bf16.msra.mxu0 0
    %558 = vmatprep.subr.bf16.mxu0 0
    %559 = vmatpush1.bf16.msra.mxu0 0
    %560 = vmatprep.mubr.bf16.mxu0 0
    %561 = vmatmul.mubr.bf16.gmra.mrb[0].mxu0 %v67
    %v562 = vpop.f32.mrb[0].mxu0
    %v563 = vadd.f32 0.0, %v562
    %v564 = vpop.f32.mrb[0].mxu0
    %v565 = vadd.f32 0.0, %v564
    %v566 = vpop.f32.mrb[0].mxu0
    %v567 = vadd.f32 0.0, %v566
    %v568 = vpop.f32.mrb[0].mxu0
    %v569 = vadd.f32 0.0, %v568
    %570 = vmatprep.mubr.bf16.mxu0 0
    %571 = vmatmul.mubr.bf16.gmra.mrb[0].mxu0 %v68
    %v572 = vpop.f32.mrb[0].mxu0
    %v573 = vadd.f32 0.0, %v572
    %v574 = vpop.f32.mrb[0].mxu0
    %v575 = vadd.f32 0.0, %v574
    %v576 = vpop.f32.mrb[0].mxu0
    %v577 = vadd.f32 0.0, %v576
    %v578 = vpop.f32.mrb[0].mxu0
    %v579 = vadd.f32 0.0, %v578
    %580 = vmatprep.mubr.bf16.mxu0 0
    %581 = vmatmul.mubr.bf16.gmra.mrb[0].mxu0 %v69
    %v582 = vpop.f32.mrb[0].mxu0
    %v583 = vadd.f32 0.0, %v582
    %v584 = vpop.f32.mrb[0].mxu0
    %v585 = vadd.f32 0.0, %v584
    %v586 = vpop.f32.mrb[0].mxu0
    %v587 = vadd.f32 0.0, %v586
    %v588 = vpop.f32.mrb[0].mxu0
    %v589 = vadd.f32 0.0, %v588
    %590 = vmatprep.mubr.bf16.mxu0 0
    %591 = vmatmul.mubr.bf16.gmra.mrb[0].mxu0 %v70
    %v592 = vpop.f32.mrb[0].mxu0
    %v593 = vadd.f32 0.0, %v592
    %v594 = vpop.f32.mrb[0].mxu0
    %v595 = vadd.f32 0.0, %v594
    %v596 = vpop.f32.mrb[0].mxu0
    %v597 = vadd.f32 0.0, %v596
    %v598 = vpop.f32.mrb[0].mxu0
    %v599 = vadd.f32 0.0, %v598
    %600 = vdwg.mxu0
    %601 = vmatprep.subr.bf16.mxu0 %v332
    %602 = vmatpush1.bf16.msra.mxu0 %v331
    %603 = vmatprep.subr.bf16.mxu0 %v340
    %604 = vmatpush1.bf16.msra.mxu0 %v339
    %605 = vmatprep.subr.bf16.mxu0 %v348
    %606 = vmatpush1.bf16.msra.mxu0 %v347
    %607 = vmatprep.subr.bf16.mxu0 %v356
    %608 = vmatpush1.bf16.msra.mxu0 %v355
    %609 = vmatprep.subr.bf16.mxu0 %v364
    %610 = vmatpush1.bf16.msra.mxu0 %v363
    %611 = vmatprep.subr.bf16.mxu0 %v372
    %612 = vmatpush1.bf16.msra.mxu0 %v371
    %613 = vmatprep.subr.bf16.mxu0 %v380
    %614 = vmatpush1.bf16.msra.mxu0 %v379
    %615 = vmatprep.subr.bf16.mxu0 %v388
    %616 = vmatpush1.bf16.msra.mxu0 %v387
    %617 = vmatprep.subr.bf16.mxu0 0
    %618 = vmatpush1.bf16.msra.mxu0 0
    %619 = vmatprep.subr.bf16.mxu0 0
    %620 = vmatpush1.bf16.msra.mxu0 0
    %621 = vmatprep.subr.bf16.mxu0 0
    %622 = vmatpush1.bf16.msra.mxu0 0
    %623 = vmatprep.subr.bf16.mxu0 0
    %624 = vmatpush1.bf16.msra.mxu0 0
    %625 = vmatprep.subr.bf16.mxu0 0
    %626 = vmatpush1.bf16.msra.mxu0 0
    %627 = vmatprep.subr.bf16.mxu0 0
    %628 = vmatpush1.bf16.msra.mxu0 0
    %629 = vmatprep.subr.bf16.mxu0 0
    %630 = vmatpush1.bf16.msra.mxu0 0
    %631 = vmatprep.subr.bf16.mxu0 0
    %632 = vmatpush1.bf16.msra.mxu0 0
    %633 = vmatprep.mubr.bf16.mxu0 0
    %634 = vmatmul.mubr.bf16.gmra.mrb[0].mxu0 %v67
    %v635 = vpop.f32.mrb[0].mxu0
    %v636 = vadd.f32 0.0, %v635
    %v637 = vpop.f32.mrb[0].mxu0
    %v638 = vadd.f32 0.0, %v637
    %v639 = vpop.f32.mrb[0].mxu0
    %v640 = vadd.f32 0.0, %v639
    %v641 = vpop.f32.mrb[0].mxu0
    %v642 = vadd.f32 0.0, %v641
    %643 = vmatprep.mubr.bf16.mxu0 0
    %644 = vmatmul.mubr.bf16.gmra.mrb[0].mxu0 %v68
    %v645 = vpop.f32.mrb[0].mxu0
    %v646 = vadd.f32 0.0, %v645
    %v647 = vpop.f32.mrb[0].mxu0
    %v648 = vadd.f32 0.0, %v647
    %v649 = vpop.f32.mrb[0].mxu0
    %v650 = vadd.f32 0.0, %v649
    %v651 = vpop.f32.mrb[0].mxu0
    %v652 = vadd.f32 0.0, %v651
    %653 = vmatprep.mubr.bf16.mxu0 0
    %654 = vmatmul.mubr.bf16.gmra.mrb[0].mxu0 %v69
    %v655 = vpop.f32.mrb[0].mxu0
    %v656 = vadd.f32 0.0, %v655
    %v657 = vpop.f32.mrb[0].mxu0
    %v658 = vadd.f32 0.0, %v657
    %v659 = vpop.f32.mrb[0].mxu0
    %v660 = vadd.f32 0.0, %v659
    %v661 = vpop.f32.mrb[0].mxu0
    %v662 = vadd.f32 0.0, %v661
    %663 = vmatprep.mubr.bf16.mxu0 0
    %664 = vmatmul.mubr.bf16.gmra.mrb[0].mxu0 %v70
    %v665 = vpop.f32.mrb[0].mxu0
    %v666 = vadd.f32 0.0, %v665
    %v667 = vpop.f32.mrb[0].mxu0
    %v668 = vadd.f32 0.0, %v667
    %v669 = vpop.f32.mrb[0].mxu0
    %v670 = vadd.f32 0.0, %v669
    %v671 = vpop.f32.mrb[0].mxu0
    %v672 = vadd.f32 0.0, %v671
    %673 = vdwg.mxu0
    %674 = vmatprep.subr.bf16.mxu0 %v334
    %675 = vmatpush1.bf16.msra.mxu0 %v333
    %676 = vmatprep.subr.bf16.mxu0 %v342
    %677 = vmatpush1.bf16.msra.mxu0 %v341
    %678 = vmatprep.subr.bf16.mxu0 %v350
    %679 = vmatpush1.bf16.msra.mxu0 %v349
    %680 = vmatprep.subr.bf16.mxu0 %v358
    %681 = vmatpush1.bf16.msra.mxu0 %v357
    %682 = vmatprep.subr.bf16.mxu0 %v366
    %683 = vmatpush1.bf16.msra.mxu0 %v365
    %684 = vmatprep.subr.bf16.mxu0 %v374
    %685 = vmatpush1.bf16.msra.mxu0 %v373
    %686 = vmatprep.subr.bf16.mxu0 %v382
    %687 = vmatpush1.bf16.msra.mxu0 %v381
    %688 = vmatprep.subr.bf16.mxu0 %v390
    %689 = vmatpush1.bf16.msra.mxu0 %v389
    %690 = vmatprep.subr.bf16.mxu0 0
    %691 = vmatpush1.bf16.msra.mxu0 0
    %692 = vmatprep.subr.bf16.mxu0 0
    %693 = vmatpush1.bf16.msra.mxu0 0
    %694 = vmatprep.subr.bf16.mxu0 0
    %695 = vmatpush1.bf16.msra.mxu0 0
    %696 = vmatprep.subr.bf16.mxu0 0
    %697 = vmatpush1.bf16.msra.mxu0 0
    %698 = vmatprep.subr.bf16.mxu0 0
    %699 = vmatpush1.bf16.msra.mxu0 0
    %700 = vmatprep.subr.bf16.mxu0 0
    %701 = vmatpush1.bf16.msra.mxu0 0
    %702 = vmatprep.subr.bf16.mxu0 0
    %703 = vmatpush1.bf16.msra.mxu0 0
    %704 = vmatprep.subr.bf16.mxu0 0
    %705 = vmatpush1.bf16.msra.mxu0 0
    %706 = vmatprep.mubr.bf16.mxu0 0
    %707 = vmatmul.mubr.bf16.gmra.mrb[0].mxu0 %v67
    %v708 = vpop.f32.mrb[0].mxu0
    %v709 = vadd.f32 0.0, %v708
    %v710 = vpop.f32.mrb[0].mxu0
    %v711 = vadd.f32 0.0, %v710
    %v712 = vpop.f32.mrb[0].mxu0
    %v713 = vadd.f32 0.0, %v712
    %v714 = vpop.f32.mrb[0].mxu0
    %v715 = vadd.f32 0.0, %v714
    %716 = vmatprep.mubr.bf16.mxu0 0
    %717 = vmatmul.mubr.bf16.gmra.mrb[0].mxu0 %v68
    %v718 = vpop.f32.mrb[0].mxu0
    %v719 = vadd.f32 0.0, %v718
    %v720 = vpop.f32.mrb[0].mxu0
    %v721 = vadd.f32 0.0, %v720
    %v722 = vpop.f32.mrb[0].mxu0
    %v723 = vadd.f32 0.0, %v722
    %v724 = vpop.f32.mrb[0].mxu0
    %v725 = vadd.f32 0.0, %v724
    %726 = vmatprep.mubr.bf16.mxu0 0
    %727 = vmatmul.mubr.bf16.gmra.mrb[0].mxu0 %v69
    %v728 = vpop.f32.mrb[0].mxu0
    %v729 = vadd.f32 0.0, %v728
    %v730 = vpop.f32.mrb[0].mxu0
    %v731 = vadd.f32 0.0, %v730
    %v732 = vpop.f32.mrb[0].mxu0
    %v733 = vadd.f32 0.0, %v732
    %v734 = vpop.f32.mrb[0].mxu0
    %v735 = vadd.f32 0.0, %v734
    %736 = vmatprep.mubr.bf16.mxu0 0
    %737 = vmatmul.mubr.bf16.gmra.mrb[0].mxu0 %v70
    %v738 = vpop.f32.mrb[0].mxu0
    %v739 = vadd.f32 0.0, %v738
    %v740 = vpop.f32.mrb[0].mxu0
    %v741 = vadd.f32 0.0, %v740
    %v742 = vpop.f32.mrb[0].mxu0
    %v743 = vadd.f32 0.0, %v742
    %v744 = vpop.f32.mrb[0].mxu0
    %v745 = vadd.f32 0.0, %v744
    %746 = vdwg.mxu0
    %v748 = vlaneseq
    %v749 = vshrl.u32 %v748, 7
    %v750 = vsub.s32 0, %v749
    %v751 = vrot.slane %v58, %v750
    %v752 = vlaneseq
    %v753 = vshrl.u32 %v752, 7
    %v754 = vsub.s32 1, %v753
    %v755 = vrot.slane %v58, %v754
    %v756 = vlaneseq
    %v757 = vshrl.u32 %v756, 7
    %v758 = vsub.s32 2, %v757
    %v759 = vrot.slane %v58, %v758
    %v760 = vlaneseq
    %v761 = vshrl.u32 %v760, 7
    %v762 = vsub.s32 3, %v761
    %v763 = vrot.slane %v58, %v762
    %v764 = vlaneseq
    %v765 = vshrl.u32 %v764, 7
    %v766 = vsub.s32 4, %v765
    %v767 = vrot.slane %v58, %v766
    %v768 = vlaneseq
    %v769 = vshrl.u32 %v768, 7
    %v770 = vsub.s32 5, %v769
    %v771 = vrot.slane %v58, %v770
    %v772 = vlaneseq
    %v773 = vshrl.u32 %v772, 7
    %v774 = vsub.s32 6, %v773
    %v775 = vrot.slane %v58, %v774
    %v776 = vlaneseq
    %v777 = vshrl.u32 %v776, 7
    %v778 = vsub.s32 7, %v777
    %v779 = vrot.slane %v58, %v778
    %v788 = vadd.f32 %v751, %v490
    %v789 = vadd.f32 %v755, %v492
    %v790 = vadd.f32 %v759, %v563
    %v791 = vadd.f32 %v763, %v565
    %v792 = vadd.f32 %v767, %v636
    %v793 = vadd.f32 %v771, %v638
    %v794 = vadd.f32 %v775, %v709
    %v795 = vadd.f32 %v779, %v711
    %v796 = vadd.f32 %v751, %v494
    %v797 = vadd.f32 %v755, %v496
    %v798 = vadd.f32 %v759, %v567
    %v799 = vadd.f32 %v763, %v569
    %v800 = vadd.f32 %v767, %v640
    %v801 = vadd.f32 %v771, %v642
    %v802 = vadd.f32 %v775, %v713
    %v803 = vadd.f32 %v779, %v715
    %v804 = vadd.f32 %v751, %v500
    %v805 = vadd.f32 %v755, %v502
    %v806 = vadd.f32 %v759, %v573
    %v807 = vadd.f32 %v763, %v575
    %v808 = vadd.f32 %v767, %v646
    %v809 = vadd.f32 %v771, %v648
    %v810 = vadd.f32 %v775, %v719
    %v811 = vadd.f32 %v779, %v721
    %v812 = vadd.f32 %v751, %v504
    %v813 = vadd.f32 %v755, %v506
    %v814 = vadd.f32 %v759, %v577
    %v815 = vadd.f32 %v763, %v579
    %v816 = vadd.f32 %v767, %v650
    %v817 = vadd.f32 %v771, %v652
    %v818 = vadd.f32 %v775, %v723
    %v819 = vadd.f32 %v779, %v725
    %v820 = vadd.f32 %v751, %v510
    %v821 = vadd.f32 %v755, %v512
    %v822 = vadd.f32 %v759, %v583
    %v823 = vadd.f32 %v763, %v585
    %v824 = vadd.f32 %v767, %v656
    %v825 = vadd.f32 %v771, %v658
    %v826 = vadd.f32 %v775, %v729
    %v827 = vadd.f32 %v779, %v731
    %v828 = vadd.f32 %v751, %v514
    %v829 = vadd.f32 %v755, %v516
    %v830 = vadd.f32 %v759, %v587
    %v831 = vadd.f32 %v763, %v589
    %v832 = vadd.f32 %v767, %v660
    %v833 = vadd.f32 %v771, %v662
    %v834 = vadd.f32 %v775, %v733
    %v835 = vadd.f32 %v779, %v735
    %v836 = vadd.f32 %v751, %v520
    %v837 = vadd.f32 %v755, %v522
    %v838 = vadd.f32 %v759, %v593
    %v839 = vadd.f32 %v763, %v595
    %v840 = vadd.f32 %v767, %v666
    %v841 = vadd.f32 %v771, %v668
    %v842 = vadd.f32 %v775, %v739
    %v843 = vadd.f32 %v779, %v741
    %v844 = vadd.f32 %v751, %v524
    %v845 = vadd.f32 %v755, %v526
    %v846 = vadd.f32 %v759, %v597
    %v847 = vadd.f32 %v763, %v599
    %v848 = vadd.f32 %v767, %v670
    %v849 = vadd.f32 %v771, %v672
    %v850 = vadd.f32 %v775, %v743
    %v851 = vadd.f32 %v779, %v745
    %852 = vst [vmem:[#allocation8] sm:$0xff] %v788
    %853 = vst [vmem:[#allocation8 + $0x8] sm:$0xff] %v789
    %854 = vst [vmem:[#allocation8 + $0x10] sm:$0xff] %v790
    %855 = vst [vmem:[#allocation8 + $0x18] sm:$0xff] %v791
    %856 = vst [vmem:[#allocation8 + $0x20] sm:$0xff] %v796
    %857 = vst [vmem:[#allocation8 + $0x28] sm:$0xff] %v797
    %858 = vst [vmem:[#allocation8 + $0x30] sm:$0xff] %v798
    %859 = vst [vmem:[#allocation8 + $0x38] sm:$0xff] %v799
    %860 = vst [vmem:[#allocation8 + $0x40] sm:$0xff] %v804
    %861 = vst [vmem:[#allocation8 + $0x48] sm:$0xff] %v805
    %862 = vst [vmem:[#allocation8 + $0x50] sm:$0xff] %v806
    %863 = vst [vmem:[#allocation8 + $0x58] sm:$0xff] %v807
    %864 = vst [vmem:[#allocation8 + $0x60] sm:$0xff] %v812
    %865 = vst [vmem:[#allocation8 + $0x68] sm:$0xff] %v813
    %866 = vst [vmem:[#allocation8 + $0x70] sm:$0xff] %v814
    %867 = vst [vmem:[#allocation8 + $0x78] sm:$0xff] %v815
    %868 = vst [vmem:[#allocation8 + $0x80] sm:$0xff] %v820
    %869 = vst [vmem:[#allocation8 + $0x88] sm:$0xff] %v821
    %870 = vst [vmem:[#allocation8 + $0x90] sm:$0xff] %v822
    %871 = vst [vmem:[#allocation8 + $0x98] sm:$0xff] %v823
    %872 = vst [vmem:[#allocation8 + $0xa0] sm:$0xff] %v828
    %873 = vst [vmem:[#allocation8 + $0xa8] sm:$0xff] %v829
    %874 = vst [vmem:[#allocation8 + $0xb0] sm:$0xff] %v830
    %875 = vst [vmem:[#allocation8 + $0xb8] sm:$0xff] %v831
    %876 = vst [vmem:[#allocation8 + $0xc0] sm:$0xff] %v836
    %877 = vst [vmem:[#allocation8 + $0xc8] sm:$0xff] %v837
    %878 = vst [vmem:[#allocation8 + $0xd0] sm:$0xff] %v838
    %879 = vst [vmem:[#allocation8 + $0xd8] sm:$0xff] %v839
    %880 = vst [vmem:[#allocation8 + $0xe0] sm:$0xff] %v844
    %881 = vst [vmem:[#allocation8 + $0xe8] sm:$0xff] %v845
    %882 = vst [vmem:[#allocation8 + $0xf0] sm:$0xff] %v846
    %883 = vst [vmem:[#allocation8 + $0xf8] sm:$0xff] %v847
    %884 = vst [vmem:[#allocation9] sm:$0xff] %v792
    %885 = vst [vmem:[#allocation9 + $0x8] sm:$0xff] %v793
    %886 = vst [vmem:[#allocation9 + $0x10] sm:$0xff] %v794
    %887 = vst [vmem:[#allocation9 + $0x18] sm:$0xff] %v795
    %888 = vst [vmem:[#allocation9 + $0x20] sm:$0xff] %v800
    %889 = vst [vmem:[#allocation9 + $0x28] sm:$0xff] %v801
    %890 = vst [vmem:[#allocation9 + $0x30] sm:$0xff] %v802
    %891 = vst [vmem:[#allocation9 + $0x38] sm:$0xff] %v803
    %892 = vst [vmem:[#allocation9 + $0x40] sm:$0xff] %v808
    %893 = vst [vmem:[#allocation9 + $0x48] sm:$0xff] %v809
    %894 = vst [vmem:[#allocation9 + $0x50] sm:$0xff] %v810
    %895 = vst [vmem:[#allocation9 + $0x58] sm:$0xff] %v811
    %896 = vst [vmem:[#allocation9 + $0x60] sm:$0xff] %v816
    %897 = vst [vmem:[#allocation9 + $0x68] sm:$0xff] %v817
    %898 = vst [vmem:[#allocation9 + $0x70] sm:$0xff] %v818
    %899 = vst [vmem:[#allocation9 + $0x78] sm:$0xff] %v819
    %900 = vst [vmem:[#allocation9 + $0x80] sm:$0xff] %v824
    %901 = vst [vmem:[#allocation9 + $0x88] sm:$0xff] %v825
    %902 = vst [vmem:[#allocation9 + $0x90] sm:$0xff] %v826
    %903 = vst [vmem:[#allocation9 + $0x98] sm:$0xff] %v827
    %904 = vst [vmem:[#allocation9 + $0xa0] sm:$0xff] %v832
    %905 = vst [vmem:[#allocation9 + $0xa8] sm:$0xff] %v833
    %906 = vst [vmem:[#allocation9 + $0xb0] sm:$0xff] %v834
    %907 = vst [vmem:[#allocation9 + $0xb8] sm:$0xff] %v835
    %908 = vst [vmem:[#allocation9 + $0xc0] sm:$0xff] %v840
    %909 = vst [vmem:[#allocation9 + $0xc8] sm:$0xff] %v841
    %910 = vst [vmem:[#allocation9 + $0xd0] sm:$0xff] %v842
    %911 = vst [vmem:[#allocation9 + $0xd8] sm:$0xff] %v843
    %912 = vst [vmem:[#allocation9 + $0xe0] sm:$0xff] %v848
    %913 = vst [vmem:[#allocation9 + $0xe8] sm:$0xff] %v849
    %914 = vst [vmem:[#allocation9 + $0xf0] sm:$0xff] %v850
    %915 = vst [vmem:[#allocation9 + $0xf8] sm:$0xff] %v851
    // Predicated region
    $region26: #{tpu_custom_call.1} parent=1 // pred_check
      _
    $region27: #{tpu_custom_call.1} parent=1 // pred_check_branch
      %917 = sbr.rel (0) target = $region29
    $region28: #{tpu_custom_call.1} parent=1 // pred_region
      %s919 = ssub.s32 4096, 4096
      %920 = vsyncadd [#allocation4], %s919
      %s921 = sshll.u32 [#allocation8], 4
      %s922 = int_to_ptr.vmem [resolvable:$true] %s921
      %927 = dma.vmem_to_hbm [thread:$0]  %s922, 4096, %s3, [#allocation4], 512, 512, 32
    $region29: #{tpu_custom_call.1} parent=1 // pred_fallthru
      _
    // Predicated region
    $region30: #{tpu_custom_call.1} parent=1 // pred_check
      _
    $region31: #{tpu_custom_call.1} parent=1 // pred_check_branch
      %929 = sbr.rel (0) target = $region33
    $region32: #{tpu_custom_call.1} parent=1 // pred_region
      %s931 = ssub.s32 4096, 4096
      %932 = vsyncadd [#allocation10], %s931
      %s933 = sshll.u32 [#allocation9], 4
      %s934 = int_to_ptr.vmem [resolvable:$true] %s933
      %939 = dma.vmem_to_hbm [thread:$0]  %s934, 4096, %s4, [#allocation10], 512, 512, 32
    $region33: #{tpu_custom_call.1} parent=1 // pred_fallthru
      _
    // Predicated region
    $region34: #{tpu_custom_call.1} parent=1 // pred_check
      _
    $region35: #{tpu_custom_call.1} parent=1 // pred_check_branch
      %941 = sbr.rel (0) target = $region37
    $region36: #{tpu_custom_call.1} parent=1 // pred_region
      %942 = dma.done [#allocation4], 4096
    $region37: #{tpu_custom_call.1} parent=1 // pred_fallthru
      _
    // Predicated region
    $region38: #{tpu_custom_call.1} parent=1 // pred_check
      _
    $region39: #{tpu_custom_call.1} parent=1 // pred_check_branch
      %944 = sbr.rel (0) target = $region41
    $region40: #{tpu_custom_call.1} parent=1 // pred_region
      %945 = dma.done [#allocation10], 4096
    $region41: #{tpu_custom_call.1} parent=1 // pred_fallthru
      _
    %946 = vsyncpa [#allocation3], 1
    %947 = vsyncpa [#allocation6], 1
    %948 = vsyncpa [#allocation4], 1
    %949 = vsyncpa [#allocation10], 1

</llo_original>
